<compile_context>
chip_gen: v5e
topology: v5e:2x2
jax: 0.10.0
libtpu: 0.0.40
codegen_flags: <defaults>
</compile_context>

<pallas_src>
import jax
import jax.numpy as jnp
from jax.experimental import pallas as pl
from jax.experimental.pallas import tpu as pltpu


def _gradient_kernel(x_ref, o_ref):
    """3x3 gradient stencil (valid conv) on a (BN, H, W) block.

    PyTorch F.conv2d is cross-correlation, so with
      Kx = [[-1,0,1],[-2,0,2],[-1,0,1]]:
        r[i,j]  = x[i,j] + 2*x[i+1,j] + x[i+2,j]
        gx[i,j] = r[i,j+2] - r[i,j]
      Ky = [[-1,-2,1],[0,0,0],[1,2,1]]:
        d = x[i+2]-x[i];  s = x[i+2]+x[i]
        gy[i,j] = d[i,j] + 2*d[i,j+1] + s[i,j+2]

    Output is written directly at the valid size (H-2, W-2): no HBM pad pass
    on the input and no crop pass on the output.
    """
    _, H, W = x_ref.shape
    HO, WO = H - 2, W - 2

    # Row-shifted windows loaded straight from the VMEM block (sublane offsets).
    top = x_ref[:, pl.ds(0, HO), :].astype(jnp.float32)   # x[i]
    mid = x_ref[:, pl.ds(1, HO), :].astype(jnp.float32)   # x[i+1]
    bot = x_ref[:, pl.ds(2, HO), :].astype(jnp.float32)   # x[i+2]

    # |grad_x| first so `r` can die before the grad_y temporaries are built
    # (halves peak VMEM scratch — matters most on v7x's 64 MiB VMEM).
    r = top + 2.0 * mid + bot                              # (BN, HO, W)
    acc = jnp.abs(r[:, :, 2:2 + WO] - r[:, :, 0:WO])       # |gx|, (BN, HO, WO)

    d = bot - top
    s = bot + top
    gy = d[:, :, 0:WO] + 2.0 * d[:, :, 1:1 + WO] + s[:, :, 2:2 + WO]

    # Single full-block store (keeps the single vst slot on v5e happy).
    o_ref[...] = (acc + jnp.abs(gy)).astype(o_ref.dtype)


def _pick_block_batch(n, bytes_per_img, target_block_bytes):
    """Largest divisor of n that fits the byte target and leaves >= 2 grid steps."""
    desired = max(1, int(target_block_bytes // max(bytes_per_img, 1)))
    if n >= 2:
        desired = min(desired, n // 2)   # v7x: keep both TensorCores busy
    desired = max(1, min(desired, n))
    for bn in range(desired, 0, -1):
        if n % bn == 0:                  # divisor of N -> no batch padding
            return bn
    return 1


def cal_gradient(x, *, block_batch=None, target_block_bytes=4 << 20):
    """x: (N, 1, H, W) -> (N, 1, H-2, W-2) = |conv2d(x,Kx)| + |conv2d(x,Ky)| (valid)."""
    N, C, H, W = x.shape
    assert C == 1, "F.conv2d with weight (1,1,3,3) requires a single input channel"
    assert H >= 3 and W >= 3, "valid 3x3 conv needs H >= 3 and W >= 3"
    HO, WO = H - 2, W - 2

    itemsize = jnp.dtype(x.dtype).itemsize
    in_img_bytes = H * W * itemsize
    out_img_bytes = HO * WO * itemsize
    if block_batch is None:
        BN = _pick_block_batch(N, in_img_bytes + out_img_bytes, target_block_bytes)
    else:
        BN = int(block_batch)
        assert N % BN == 0, "block_batch must divide N"
    grid = (N // BN,)

    # VMEM budget: double-buffered in/out blocks + ~8 block-sized stencil
    # temporaries (top/mid/bot, r, d, s, shifted copies).  Keep <= 56 MiB so it
    # is safe on v7x (64 MiB physical VMEM).
    in_blk = BN * in_img_bytes
    out_blk = BN * out_img_bytes
    vmem_limit = int(min(max(2 * (in_blk + out_blk) + 8 * in_blk + (4 << 20),
                             32 << 20), 56 << 20))
    # TODO(synk): for single frames too large for one block (>~6-8 MiB/image on
    # v7x), add an H-tiled variant with a 2-row halo via manual DMA (pl.ANY +
    # make_async_copy); whole-image blocks are fine at these sizes.

    x3 = x.reshape(N, H, W)   # drops the unit channel dim; no data movement

    out = pl.pallas_call(
        _gradient_kernel,
        out_shape=jax.ShapeDtypeStruct((N, HO, WO), x.dtype),
        grid_spec=pltpu.PrefetchScalarGridSpec(
            num_scalar_prefetch=0,
            grid=grid,
            # Full spatial dims in the block -> no (8,128) constraint, no pad.
            in_specs=[pl.BlockSpec((BN, H, W), lambda n: (n, 0, 0))],
            out_specs=pl.BlockSpec((BN, HO, WO), lambda n: (n, 0, 0)),
        ),
        compiler_params=pltpu.CompilerParams(
            dimension_semantics=("parallel",),
            vmem_limit_bytes=vmem_limit,
        ),
    )(x3)

    return out.reshape(N, 1, HO, WO)


def _reference(x):
    """Pure-JAX reference of the PyTorch forward (for sanity check)."""
    kx = jnp.array([[-1.0, 0.0, 1.0], [-2.0, 0.0, 2.0], [-1.0, 0.0, 1.0]],
                   dtype=jnp.float32).reshape(1, 1, 3, 3)
    ky = jnp.array([[-1.0, -2.0, 1.0], [0.0, 0.0, 0.0], [1.0, 2.0, 1.0]],
                   dtype=jnp.float32).reshape(1, 1, 3, 3)
    dn = jax.lax.conv_dimension_numbers(x.shape, kx.shape, ("NCHW", "OIHW", "NCHW"))
    gx = jax.lax.conv_general_dilated(x, kx, (1, 1), "VALID", dimension_numbers=dn)
    gy = jax.lax.conv_general_dilated(x, ky, (1, 1), "VALID", dimension_numbers=dn)
    return jnp.abs(gx) + jnp.abs(gy)


if __name__ == "__main__":
    key = jax.random.PRNGKey(0)
    x = jax.random.normal(key, (2, 1, 16, 16), dtype=jnp.float32)

    out = jax.block_until_ready(cal_gradient(x))

    ref = jax.block_until_ready(_reference(x))
    assert out.shape == (2, 1, 14, 14), out.shape
    assert jnp.allclose(out, ref, atol=1e-4, rtol=1e-4), "mismatch vs reference"

    print("KERNEL_OK")
</pallas_src>

<mosaic_0001>
module attributes {stable_mosaic.version = 11 : i64} {
  func.func @_gradient_kernel(%arg0: i32, %arg1: memref<1x16x16xf32, #tpu.memory_space<vmem>>, %arg2: memref<1x14x14xf32, #tpu.memory_space<vmem>>) attributes {dimension_semantics = [#tpu.dimension_semantics<parallel>], iteration_bounds = array<i64: 2>, scalar_prefetch = 0 : i64, scratch_operands = 0 : i64, tpu.core_type = #tpu.core_type<tc>, window_params = [{transform_indices = @transform_0, window_bounds = array<i64: 1, 16, 16>}, {transform_indices = @transform_1, window_bounds = array<i64: 1, 14, 14>}]} {
    %c0 = arith.constant 0 : index
    %c0_0 = arith.constant 0 : index
    %c0_1 = arith.constant 0 : index
    %0 = vector.load %arg1[%c0, %c0_0, %c0_1] : memref<1x16x16xf32, #tpu.memory_space<vmem>>, vector<1x14x16xf32>
    %c0_2 = arith.constant 0 : index
    %c1 = arith.constant 1 : index
    %c0_3 = arith.constant 0 : index
    %1 = vector.load %arg1[%c0_2, %c1, %c0_3] : memref<1x16x16xf32, #tpu.memory_space<vmem>>, vector<1x14x16xf32>
    %c0_4 = arith.constant 0 : index
    %c2 = arith.constant 2 : index
    %c0_5 = arith.constant 0 : index
    %2 = vector.load %arg1[%c0_4, %c2, %c0_5] : memref<1x16x16xf32, #tpu.memory_space<vmem>>, vector<1x14x16xf32>
    %cst = arith.constant 2.000000e+00 : f32
    %3 = vector.broadcast %cst : f32 to vector<1x14x16xf32>
    %4 = arith.mulf %3, %1 : vector<1x14x16xf32>
    %5 = arith.addf %0, %4 : vector<1x14x16xf32>
    %6 = arith.addf %5, %2 : vector<1x14x16xf32>
    %7 = vector.extract_strided_slice %6 {offsets = [0, 0, 2], sizes = [1, 14, 14], strides = [1, 1, 1]} : vector<1x14x16xf32> to vector<1x14x14xf32>
    %8 = vector.extract_strided_slice %6 {offsets = [0, 0, 0], sizes = [1, 14, 14], strides = [1, 1, 1]} : vector<1x14x16xf32> to vector<1x14x14xf32>
    %9 = arith.subf %7, %8 : vector<1x14x14xf32>
    %10 = math.absf %9 : vector<1x14x14xf32>
    %11 = arith.subf %2, %0 : vector<1x14x16xf32>
    %12 = arith.addf %2, %0 : vector<1x14x16xf32>
    %13 = vector.extract_strided_slice %11 {offsets = [0, 0, 0], sizes = [1, 14, 14], strides = [1, 1, 1]} : vector<1x14x16xf32> to vector<1x14x14xf32>
    %14 = vector.extract_strided_slice %11 {offsets = [0, 0, 1], sizes = [1, 14, 14], strides = [1, 1, 1]} : vector<1x14x16xf32> to vector<1x14x14xf32>
    %cst_6 = arith.constant 2.000000e+00 : f32
    %15 = vector.broadcast %cst_6 : f32 to vector<1x14x14xf32>
    %16 = arith.mulf %15, %14 : vector<1x14x14xf32>
    %17 = arith.addf %13, %16 : vector<1x14x14xf32>
    %18 = vector.extract_strided_slice %12 {offsets = [0, 0, 2], sizes = [1, 14, 14], strides = [1, 1, 1]} : vector<1x14x16xf32> to vector<1x14x14xf32>
    %19 = arith.addf %17, %18 : vector<1x14x14xf32>
    %20 = math.absf %19 : vector<1x14x14xf32>
    %21 = arith.addf %10, %20 : vector<1x14x14xf32>
    %c0_7 = arith.constant 0 : index
    %c0_8 = arith.constant 0 : index
    %c0_9 = arith.constant 0 : index
    %22 = vector.load %arg2[%c0_7, %c0_8, %c0_9] : memref<1x14x14xf32, #tpu.memory_space<vmem>>, vector<1x14x14xf32>
    tpu.vector_store %arg2[%c0_7, %c0_8, %c0_9], %21 {strides = array<i32>} : memref<1x14x14xf32, #tpu.memory_space<vmem>>, vector<1x14x14xf32>,
    return
  }
  func.func @transform_0(%arg0: i32) -> (i32, i32, i32) {
    %c0_i32 = arith.constant 0 : i32
    %c0_i32_0 = arith.constant 0 : i32
    %c0_i32_1 = arith.constant 0 : i32
    return %arg0, %c0_i32, %c0_i32_0 : i32, i32, i32
  }
  func.func @transform_1(%arg0: i32) -> (i32, i32, i32) {
    %c0_i32 = arith.constant 0 : i32
    %c0_i32_0 = arith.constant 0 : i32
    %c0_i32_1 = arith.constant 0 : i32
    return %arg0, %c0_i32, %c0_i32_0 : i32, i32, i32
  }
}

</mosaic_0001>

<llo_original>
// kernel: tpu_custom_call.1
$region0: #{tpu_custom_call.1}
  #allocation0 [shape = 'u32[]', space=smem, size = 0x4, offset = 0x4, fixed_abs, tag = 'smem constant byte address 0x4 - core index']
  #allocation1 [shape = 'u32[72,128]{1,0:T(1,128)}', space=vmem, size = 0x9000, scoped, tag = 'internal scratch']
  %s0 = inlined_call_operand.hbm [shape: f32[2,16,16], index: 0, kind: input, shape index: {}]
  %s1 = inlined_call_operand.vmem [shape: f32[2,14,14], index: 1, kind: output, shape index: {}]
  %s2 = sld [smem:[#allocation0]]
  $region41: #{tpu_custom_call.1} parent=0
    _
  %s4 = ssub.s32 1, %s2
  %s5 = scalar_select 0, %s4, %s2
  $region1: #{tpu_custom_call.1} parent=0
    #allocation2 [shape = 'u8[16384]{0}', space=vmem, size = 0x4000, scoped, tag = 'input window, operand 0']
    #allocation3 [shape = 's32[2]{0}', space=sflag, size = 0x8, scoped, tag = 'scoped memory for tpu_custom_call.1']
    %6 = vsyncpa [#allocation3], 0
    %s7 = scalar_lea.sflag [#allocation3], 1
    %8 = vsyncpa %s7, 0
    loop: start=0, step=1, limit=4
    $region2: #{tpu_custom_call.1} parent=1 // loop_pre_header
      _
    $region3: #{tpu_custom_call.1} parent=1 // loop_header
      %s10 = sphi 0, %s14
      %p11 = scmp.ge.s32.totalorder %s10, 4
      %s20 = sphi 0, %s22
      %s23 = sphi 0, %s20
      %s24 = sphi 0, %s23
      %s40 = sphi 0, %s24
      %s46 = sphi 0, %s48
      %s49 = sphi 0, %s46
      %s50 = sphi 0, %s49
      %s66 = sphi 0, %s50
    $region4: #{tpu_custom_call.1} parent=1 // loop_header_branch
      %13 = sbr.rel (%p11) target = $region8
    $region5: #{tpu_custom_call.1} parent=1 // loop_body
      %s15 = ssub.s32 %s10, 1
      %s16 = ssub.s32 %s10, 2
      %s17 = sadd.s32 %s10, 1
      %s18 = ssub.s32 %s10, %s17
      %p19 = scmp.eq.s32.totalorder %s18, 0
      %s21 = sadd.s32 %s20, 1
      %s22 = scalar_select %p19, %s20, %s21
      %p25 = pneg %p19
      %p26 = scmp.eq.s32.totalorder %s10, 1
      %p27 = por %p25, %p26
      %p28 = scmp.ne.s32.totalorder %s20, %s23
      %p29 = scmp.eq.s32.totalorder %s10, 0
      %p30 = por %p28, %p29
      %p31 = scmp.ne.s32.totalorder %s20, %s23
      %p32 = scmp.eq.s32.totalorder %s15, 1
      %p33 = por %p31, %p32
      %p34 = scmp.ne.s32.totalorder %s23, %s24
      %p35 = scmp.eq.s32.totalorder %s15, 0
      %p36 = por %p34, %p35
      %p37 = scmp.ne.s32.totalorder %s23, %s24
      %p38 = scmp.eq.s32.totalorder %s16, 1
      %p39 = por %p37, %p38
      %p41 = scmp.ne.s32.totalorder %s24, %s40
      %p42 = scmp.eq.s32.totalorder %s16, 0
      %p43 = por %p41, %p42
      %s44 = ssub.s32 %s10, %s17
      %p45 = scmp.eq.s32.totalorder %s44, 0
      %s47 = sadd.s32 %s46, 1
      %s48 = scalar_select %p45, %s46, %s47
      %p51 = pneg %p45
      %p52 = scmp.eq.s32.totalorder %s10, 1
      %p53 = por %p51, %p52
      %p54 = scmp.ne.s32.totalorder %s46, %s49
      %p55 = scmp.eq.s32.totalorder %s10, 0
      %p56 = por %p54, %p55
      %p57 = scmp.ne.s32.totalorder %s46, %s49
      %p58 = scmp.eq.s32.totalorder %s15, 1
      %p59 = por %p57, %p58
      %p60 = scmp.ne.s32.totalorder %s49, %s50
      %p61 = scmp.eq.s32.totalorder %s15, 0
      %p62 = por %p60, %p61
      %p63 = scmp.ne.s32.totalorder %s49, %s50
      %p64 = scmp.eq.s32.totalorder %s16, 1
      %p65 = por %p63, %p64
      %p67 = scmp.ne.s32.totalorder %s50, %s66
      %p68 = scmp.eq.s32.totalorder %s16, 0
      %p69 = por %p67, %p68
      %p70 = scmp.le.s32.totalorder 1, %s10
      %p71 = scmp.lt.s32.totalorder %s10, 3
      %p72 = pnand %p70, %p71
      %p73 = pneg %p72
      // Predicated region
      $region9: #{tpu_custom_call.1} parent=5 // pred_check
        _
      $region10: #{tpu_custom_call.1} parent=5 // pred_check_branch
        %75 = sbr.rel (%p72) target = $region12
      $region11: #{tpu_custom_call.1} parent=5 // pred_region
        %s76 = ssub.s32 %s10, 1
      $region12: #{tpu_custom_call.1} parent=5 // pred_fallthru
        _
      %p77 = scmp.lt.s32.totalorder %s10, 2
      // Predicated region
      $region13: #{tpu_custom_call.1} parent=5 // pred_check
        %p78 = pneg %p77
      $region14: #{tpu_custom_call.1} parent=5 // pred_check_branch
        %80 = sbr.rel (%p78) target = $region16
      $region15: #{tpu_custom_call.1} parent=5 // pred_region
        // Predicated region
        $region17: #{tpu_custom_call.1} parent=15 // pred_check
          %p81 = pneg %p30
        $region18: #{tpu_custom_call.1} parent=15 // pred_check_branch
          %83 = sbr.rel (%p81) target = $region20
        $region19: #{tpu_custom_call.1} parent=15 // pred_region
          %s84 = sand.u32 %s20, 1
          %s85 = scalar_lea.sflag [#allocation3], %s84
          %s86 = sand.u32 %s20, 1
          %s87 = smul.addr %s86, 16
          %s88 = scalar_lea.vmem [#allocation2], %s87
          %90 = vsyncadd %s85, 0
          %s91 = smul.addr %s10, 2
          %s92 = smul.addr %s91, 8
          %s93 = scalar_lea.hbm %s0, %s92
          %s94 = sshll.u32 %s93, 4
          %s95 = int_to_ptr.hbm [resolvable:$true] %s94
          %s96 = sshll.u32 %s88, 4
          %s97 = int_to_ptr.vmem [resolvable:$true] %s96
          %102 = dma.hbm_to_vmem [thread:$0]  %s95, 256, %s97, %s85, 128, 128, 8
        $region20: #{tpu_custom_call.1} parent=15 // pred_fallthru
          _
      $region16: #{tpu_custom_call.1} parent=5 // pred_fallthru
        _
      %p103 = scmp.le.s32.totalorder 1, %s10
      %p104 = scmp.lt.s32.totalorder %s10, 3
      %p105 = pnand %p103, %p104
      %p106 = pneg %p105
      // Predicated region
      $region21: #{tpu_custom_call.1} parent=5 // pred_check
        _
      $region22: #{tpu_custom_call.1} parent=5 // pred_check_branch
        %108 = sbr.rel (%p105) target = $region24
      $region23: #{tpu_custom_call.1} parent=5 // pred_region
        %s109 = ssub.s32 %s10, 1
        %s110 = sand.u32 %s23, 1
        %s111 = scalar_lea.sflag [#allocation3], %s110
        %s112 = sand.u32 %s23, 1
        %s113 = smul.addr %s112, 16
        %s114 = scalar_lea.vmem [#allocation2], %s113
        // Predicated region
        $region25: #{tpu_custom_call.1} parent=23 // pred_check
          %p115 = pneg %p36
        $region26: #{tpu_custom_call.1} parent=23 // pred_check_branch
          %117 = sbr.rel (%p115) target = $region28
        $region27: #{tpu_custom_call.1} parent=23 // pred_region
          %119 = dma.done %s111, 256
        $region28: #{tpu_custom_call.1} parent=23 // pred_fallthru
          _
        %s120 = sand.u32 %s23, 1
        %s121 = scalar_lea.sflag [#allocation3], %s120
        %s122 = sand.u32 %s23, 1
        %s123 = smul.addr %s122, 16
        %s124 = scalar_lea.vmem [#allocation2], %s123
        %p125 = pneg %p36
        %p126 = pneg %p33
        %p127 = pneg %p62
        %p128 = pneg %p59
        %p129 = scmp.lt.s32.totalorder %s15, 1
        %s130 = scalar_select %p129, %s15, 1
        %s131 = smul.addr %s130, 2
        %s132 = smul.addr %s131, 8
        %s133 = scalar_lea.vmem %s1, %s132
        %p134 = scmp.lt.s32.totalorder %s15, 1
        %s135 = scalar_select %p134, %s15, 1
        %s136 = smul.addr %s135, 2
        %s137 = smul.addr %s136, 8
        %s138 = scalar_lea.vmem %s1, %s137
        %v139 = vld [vmem:[%s114] sm:$0xff]
        %v140 = vld [vmem:[%s114 + $0x8] sm:$0x3f]
        %v141 = vld [vmem:[%s114 + $0x1] sm:$0xff]
        %v142 = vld [vmem:[%s114 + $0x9] sm:$0x3f]
        %v143 = vld [vmem:[%s114 + $0x2] sm:$0xff]
        %v144 = vld [vmem:[%s114 + $0xa] sm:$0x3f]
        %v145 = vmul.f32 %v141, 2.0
        %v146 = vmul.f32 %v142, 2.0
        %v147 = vadd.f32 %v139, %v145
        %v148 = vadd.f32 %v140, %v146
        %v149 = vadd.f32 %v147, %v143
        %v150 = vadd.f32 %v148, %v144
        %153 = vrot.lane.b32.xlu0 %v149, 2
        %v154 = vpop.permute.xlu0 %153
        %155 = vrot.lane.b32.xlu0 %v150, 2
        %v156 = vpop.permute.xlu0 %155
        %v159 = vsub.f32 %v149, %v154
        %v160 = vsub.f32 %v150, %v156
        %v161 = vand.u32 2147483647, %v159
        %v162 = vand.u32 2147483647, %v160
        %v163 = vsub.f32 %v143, %v139
        %v164 = vsub.f32 %v144, %v140
        %v165 = vadd.f32 %v143, %v139
        %v166 = vadd.f32 %v144, %v140
        %v167 = vmul.f32 %v163, 2.0
        %v168 = vmul.f32 %v164, 2.0
        %171 = vrot.lane.b32.xlu0 %v167, 127
        %v172 = vpop.permute.xlu0 %171
        %173 = vrot.lane.b32.xlu0 %v168, 127
        %v174 = vpop.permute.xlu0 %173
        %v177 = vadd.f32 %v163, %v172
        %v178 = vadd.f32 %v164, %v174
        %181 = vrot.lane.b32.xlu0 %v165, 126
        %v182 = vpop.permute.xlu0 %181
        %183 = vrot.lane.b32.xlu0 %v166, 126
        %v184 = vpop.permute.xlu0 %183
        %v187 = vadd.f32 %v177, %v182
        %v188 = vadd.f32 %v178, %v184
        %v189 = vand.u32 2147483647, %v187
        %v190 = vand.u32 2147483647, %v188
        %193 = vrot.lane.b32.xlu0 %v189, 2
        %v194 = vpop.permute.xlu0 %193
        %195 = vrot.lane.b32.xlu0 %v190, 2
        %v196 = vpop.permute.xlu0 %195
        %v199 = vadd.f32 %v161, %v194
        %v200 = vadd.f32 %v162, %v196
        %203 = vrot.lane.b32.xlu0 %v199, 126
        %v204 = vpop.permute.xlu0 %203
        %205 = vrot.lane.b32.xlu0 %v200, 126
        %v206 = vpop.permute.xlu0 %205
        %vm209 = vcmask 113664
        %210 = vst.msk [vmem:[%s138] sm:$0xff] %vm209, %v204
        %vm211 = vcmask 111616
        %212 = vst.msk [vmem:[%s138 + $0x8] sm:$0x3f] %vm211, %v206
        %p213 = scmp.lt.s32.totalorder %s15, 1
        %s214 = scalar_select %p213, %s15, 1
        %s215 = smul.addr %s214, 2
        %s216 = smul.addr %s215, 8
        %s217 = scalar_lea.vmem %s1, %s216
        // Predicated region
        $region29: #{tpu_custom_call.1} parent=23 // pred_check
          %p218 = pneg %p59
        $region30: #{tpu_custom_call.1} parent=23 // pred_check_branch
          %220 = sbr.rel (%p218) target = $region32
        $region31: #{tpu_custom_call.1} parent=23 // pred_region
          _
        $region32: #{tpu_custom_call.1} parent=23 // pred_fallthru
          _
      $region24: #{tpu_custom_call.1} parent=5 // pred_fallthru
        _
      %p221 = scmp.le.s32.totalorder 2, %s10
      // Predicated region
      $region33: #{tpu_custom_call.1} parent=5 // pred_check
        %p222 = pneg %p221
      $region34: #{tpu_custom_call.1} parent=5 // pred_check_branch
        %224 = sbr.rel (%p222) target = $region36
      $region35: #{tpu_custom_call.1} parent=5 // pred_region
        %s225 = ssub.s32 %s10, 2
        // Predicated region
        $region37: #{tpu_custom_call.1} parent=35 // pred_check
          %p226 = pneg %p65
        $region38: #{tpu_custom_call.1} parent=35 // pred_check_branch
          %228 = sbr.rel (%p226) target = $region40
        $region39: #{tpu_custom_call.1} parent=35 // pred_region
          %p229 = scmp.lt.s32.totalorder %s16, 1
          %s230 = scalar_select %p229, %s16, 1
          %s231 = smul.addr %s230, 2
          %s232 = smul.addr %s231, 8
          %s233 = scalar_lea.vmem %s1, %s232
        $region40: #{tpu_custom_call.1} parent=35 // pred_fallthru
          _
      $region36: #{tpu_custom_call.1} parent=5 // pred_fallthru
        _
    $region6: #{tpu_custom_call.1} parent=1 // loop_footer
      %s14 = sadd.s32 1, %s10
    $region7: #{tpu_custom_call.1} parent=1 // loop_footer_branch
      %9 = sbr.rel target = $region3
    $region8: #{tpu_custom_call.1} parent=1 // loop_exit
      _
    %234 = vsyncpa [#allocation3], 1
    %s235 = scalar_lea.sflag [#allocation3], 1
    %236 = vsyncpa %s235, 1

</llo_original>
